<compile_context>
chip_gen: v5e
topology: v5e:2x2
jax: 0.10.0
libtpu: 0.0.40
codegen_flags: <defaults>
</compile_context>

<pallas_src>
import functools

import jax
import jax.numpy as jnp
from jax import lax
from jax.experimental import pallas as pl
from jax.experimental.pallas import tpu as pltpu


# -----------------------------------------------------------------------------
# Hardware introspection helpers (trace/eager time, safe fallbacks).
# -----------------------------------------------------------------------------
def _vmem_capacity_bytes():
    try:
        return int(pltpu.get_tpu_info().vmem_capacity_bytes)
    except Exception:
        return 64 * 1024 * 1024  # conservative: v7x per-TensorCore capacity


def _bf16_transcendentals_ok():
    # bf16 EUP/VPU exists on v6e and v7x; v5e (and older) must use f32 exp.
    try:
        kind = jax.devices()[0].device_kind.lower()
    except Exception:
        return False
    return ("v6" in kind) or ("v7" in kind)


# -----------------------------------------------------------------------------
# Kernel 1: normalize rows of z once and fold beta into the scaling.
#   zn = (beta / ||z_row||_2) * z, emitted as bf16 for the MXU.
# rsqrt rides the EUP; folding beta here removes an [N, M]-sized multiply from
# the hot path of kernel 2.
# -----------------------------------------------------------------------------
def _normalize_z_kernel(beta_ref, z_ref, zn_ref):
    z = z_ref[...].astype(jnp.float32)
    # NOTE: matches raw torch division semantics -- a zero row yields inf/NaN.
    inv_norm = lax.rsqrt(jnp.sum(z * z, axis=1, keepdims=True))
    zn_ref[...] = (z * (beta_ref[0] * inv_norm)).astype(jnp.bfloat16)


# -----------------------------------------------------------------------------
# Kernel 2: per M-tile -> normalize G tile, transpose-free MXU matmul
# (contract D of both operands, f32 accumulation), column-wise softmax
# (axis 0; N is whole inside every block, so no cross-step state is needed).
# -----------------------------------------------------------------------------
def _sim_softmax_kernel(zn_ref, g_ref, attn_ref, *, m_total, tm, mask_tail,
                        use_bf16_exp, skip_max):
    g = g_ref[...].astype(jnp.float32)
    if mask_tail:
        # Belt & suspenders for the partial tail tile: out-of-bounds rows are
        # replaced with ones (finite norm). Their output columns are discarded
        # by Pallas' partial-block write masking anyway (softmax is per-column).
        rows = pl.program_id(0) * tm + lax.broadcasted_iota(jnp.int32, (tm, 1), 0)
        g = jnp.where(rows < m_total, g, 1.0)

    g_inv = lax.rsqrt(jnp.sum(g * g, axis=1, keepdims=True))
    gn = (g * g_inv).astype(jnp.bfloat16)

    # sim = z @ G.T expressed transpose-free: (N, D) x (TM, D) contracting D.
    # beta is already folded into zn, so these ARE the softmax logits.
    logits = lax.dot_general(
        zn_ref[...], gn,
        dimension_numbers=(((1,), (1,)), ((), ())),
        preferred_element_type=jnp.float32)

    if skip_max:
        # Unit-norm operands bound |logits| <= |beta| (static, small), so exp
        # cannot overflow; the max-subtract XLU reduction is unnecessary.
        shifted = logits
    else:
        col_max = jnp.max(logits, axis=0, keepdims=True)
        shifted = logits - col_max

    if use_bf16_exp:
        # bf16 exp roughly doubles EUP throughput on v6e/v7x; accumulate the
        # denominator in f32 to keep the column normalization accurate.
        e = jnp.exp(shifted.astype(jnp.bfloat16)).astype(jnp.float32)
    else:
        e = jnp.exp(shifted)

    denom = jnp.sum(e, axis=0, keepdims=True)
    attn_ref[...] = (e * pl.reciprocal(denom, approx=True)).astype(attn_ref.dtype)


def inner_product(z, G, beta, *, out_dtype=jnp.float32):
    """z: [N, D], G: [M, D], beta: scalar. Returns dense attention [N, M]."""
    N, D = z.shape
    M, Dg = G.shape
    assert D == Dg, "feature dims of z and G must match"

    static_beta = float(beta) if isinstance(beta, (int, float)) else None
    beta_arr = jnp.asarray(beta, dtype=jnp.float32).reshape((1,))

    # ---- generation-aware VMEM sizing (per-TensorCore) -----------------------
    vmem_cap = _vmem_capacity_bytes()
    if vmem_cap <= 64 * 1024 * 1024:           # v7x: 64 MiB per TC
        budget, vmem_limit = 40 * 1024 * 1024, 48 * 1024 * 1024
    else:                                       # v5e / v6e: 128 MiB
        budget, vmem_limit = 92 * 1024 * 1024, 100 * 1024 * 1024

    # ---- kernel 1: hoisted z normalization (+ beta fold), tiled over N -------
    tn = min(512, N) if (N % 8 == 0) else N
    zn = pl.pallas_call(
        _normalize_z_kernel,
        out_shape=jax.ShapeDtypeStruct((N, D), jnp.bfloat16),
        grid=(pl.cdiv(N, tn),),
        in_specs=[
            pl.BlockSpec(memory_space=pltpu.SMEM),        # beta scalar
            pl.BlockSpec((tn, D), lambda i: (i, 0)),      # z row tile
        ],
        out_specs=pl.BlockSpec((tn, D), lambda i: (i, 0)),
        compiler_params=pltpu.CompilerParams(
            dimension_semantics=("parallel",),
            vmem_limit_bytes=vmem_limit,
        ),
    )(beta_arr, z)

    # ---- pick a lane-dense M tile sized against the per-TC VMEM budget -------
    in_itemsize = jnp.dtype(G.dtype).itemsize
    out_itemsize = jnp.dtype(out_dtype).itemsize

    def _usage(tm_):
        return (2 * N * D * 2                    # zn bf16 (pipeline double-buffers it)
                + 2 * tm_ * D * in_itemsize      # double-buffered G tiles
                + 2 * N * tm_ * out_itemsize     # double-buffered output tiles
                + 2 * N * tm_ * 4)               # logits / exp f32 temporaries

    if M < 128:
        tm = M                                   # single tile == full dim (legal layout)
    else:
        tm = 128
        for cand in (2048, 1024, 512, 256, 128):
            if cand <= M and _usage(cand) <= budget:
                tm = cand
                break

    mask_tail = (M % tm) != 0
    use_bf16_exp = _bf16_transcendentals_ok()
    skip_max = static_beta is not None and abs(static_beta) <= 60.0

    kernel2 = functools.partial(
        _sim_softmax_kernel,
        m_total=M, tm=tm, mask_tail=mask_tail,
        use_bf16_exp=use_bf16_exp, skip_max=skip_max)

    attn = pl.pallas_call(
        kernel2,
        out_shape=jax.ShapeDtypeStruct((N, M), out_dtype),
        grid=(pl.cdiv(M, tm),),
        in_specs=[
            pl.BlockSpec((N, D), lambda j: (0, 0)),       # normalized z, resident
            pl.BlockSpec((tm, D), lambda j: (j, 0)),      # G column tile
        ],
        out_specs=pl.BlockSpec((N, tm), lambda j: (0, j)),  # lane-dense output
        compiler_params=pltpu.CompilerParams(
            dimension_semantics=("parallel",),            # megacore shard on v7x
            vmem_limit_bytes=vmem_limit,
        ),
        cost_estimate=pl.CostEstimate(
            flops=2 * N * M * D,
            transcendentals=N * M,
            bytes_accessed=2 * N * D + in_itemsize * M * D + out_itemsize * N * M),
    )(zn, G)

    # TODO(synk): torch .to_sparse() has no Pallas/TPU equivalent; returning the
    # dense attention matrix instead (identical values, dense layout).
    # TODO(synk): if N*D (or N*tm) no longer fits resident in VMEM, the dim=0
    # softmax needs a flash-style online accumulator over an N grid axis.
    return attn


def _reference(z, G, beta):
    z = z / jnp.linalg.norm(z, axis=1, keepdims=True)
    G = G / jnp.linalg.norm(G, axis=1, keepdims=True)
    sim = z @ G.T
    return jax.nn.softmax(beta * sim, axis=0)


if __name__ == "__main__":
    key = jax.random.PRNGKey(0)
    kz, kg = jax.random.split(key)

    N, M, D = 8, 8, 32          # small shapes consistent with the module's matmul
    z = jax.random.normal(kz, (N, D), dtype=jnp.float32)
    G = jax.random.normal(kg, (M, D), dtype=jnp.float32)

    # Parameter beta (torch fills with args.beta); fixed deterministically here.
    beta = 2.0

    attn = inner_product(z, G, beta)
    attn = jax.block_until_ready(attn)

    ref = _reference(z, G, beta)
    assert attn.shape == (N, M)
    # bf16 matmul operands (+ possibly bf16 exp) + approx reciprocal -> relaxed
    # but tight tolerance.
    assert jnp.allclose(attn, ref, atol=2e-2, rtol=2e-2), "mismatch vs reference"
    # softmax over dim=0: every column sums to 1 across the N rows.
    assert jnp.allclose(jnp.sum(attn, axis=0), 1.0, atol=1e-2), "columns must sum to 1"

    print("KERNEL_OK")
</pallas_src>

<mosaic_0001>
module attributes {stable_mosaic.version = 11 : i64} {
  func.func @_normalize_z_kernel(%arg0: i32, %arg1: memref<1xf32, #tpu.memory_space<smem>>, %arg2: memref<8x32xf32, #tpu.memory_space<vmem>>, %arg3: memref<8x32xbf16, #tpu.memory_space<vmem>>) attributes {dimension_semantics = [#tpu.dimension_semantics<parallel>], iteration_bounds = array<i64: 1>, scalar_prefetch = 0 : i64, scratch_operands = 0 : i64, tpu.core_type = #tpu.core_type<tc>, window_params = [{transform_indices = @transform_0, window_bounds = array<i64: 1>}, {transform_indices = @transform_1, window_bounds = array<i64: 8, 32>}, {transform_indices = @transform_2, window_bounds = array<i64: 8, 32>}]} {
    %c0 = arith.constant 0 : index
    %c0_0 = arith.constant 0 : index
    %0 = vector.load %arg2[%c0, %c0_0] : memref<8x32xf32, #tpu.memory_space<vmem>>, vector<8x32xf32>
    %1 = arith.mulf %0, %0 : vector<8x32xf32>
    %cst = arith.constant dense<0.000000e+00> : vector<8xf32>
    %2 = vector.multi_reduction <add>, %1, %cst [1] : vector<8x32xf32> to vector<8xf32>
    %3 = vector.shape_cast %2 : vector<8xf32> to vector<8x1xf32>
    %4 = math.rsqrt %3 : vector<8x1xf32>
    %c0_1 = arith.constant 0 : index
    %5 = memref.load %arg1[%c0_1] : memref<1xf32, #tpu.memory_space<smem>>
    %6 = vector.broadcast %5 : f32 to vector<8x1xf32>
    %7 = arith.mulf %6, %4 : vector<8x1xf32>
    %8 = vector.broadcast %7 : vector<8x1xf32> to vector<8x32xf32>
    %9 = arith.mulf %0, %8 : vector<8x32xf32>
    %10 = arith.truncf %9 : vector<8x32xf32> to vector<8x32xbf16>
    %c0_2 = arith.constant 0 : index
    %c0_3 = arith.constant 0 : index
    %11 = vector.load %arg3[%c0_2, %c0_3] : memref<8x32xbf16, #tpu.memory_space<vmem>>, vector<8x32xbf16>
    tpu.vector_store %arg3[%c0_2, %c0_3], %10 {strides = array<i32>} : memref<8x32xbf16, #tpu.memory_space<vmem>>, vector<8x32xbf16>,
    return
  }
  func.func @transform_0(%arg0: i32) -> i32 {
    %c0_i32 = arith.constant 0 : i32
    %c0_i32_0 = arith.constant 0 : i32
    return %c0_i32 : i32
  }
  func.func @transform_1(%arg0: i32) -> (i32, i32) {
    %c0_i32 = arith.constant 0 : i32
    %c0_i32_0 = arith.constant 0 : i32
    return %arg0, %c0_i32 : i32, i32
  }
  func.func @transform_2(%arg0: i32) -> (i32, i32) {
    %c0_i32 = arith.constant 0 : i32
    %c0_i32_0 = arith.constant 0 : i32
    return %arg0, %c0_i32 : i32, i32
  }
}

</mosaic_0001>

<llo_original>
// kernel: tpu_custom_call.1
$region0: #{tpu_custom_call.1}
  #allocation0 [shape = 'u32[]', space=smem, size = 0x4, offset = 0x4, fixed_abs, tag = 'smem constant byte address 0x4 - core index']
  #allocation1 [shape = 'u32[72,128]{1,0:T(1,128)}', space=vmem, size = 0x9000, scoped, tag = 'internal scratch']
  #allocation2 [shape = 'f32[1]{0:T(128)S(6)}', space=smem, size = 0x200, scoped, tag = 'scoped memory for tpu_custom_call.1']
  %s0 = inlined_call_operand.<no memory space> [shape: f32[1], index: 0, kind: input, shape index: {}]
  %s1 = inlined_call_operand.hbm [shape: f32[8,32], index: 1, kind: input, shape index: {}]
  %s2 = inlined_call_operand.hbm [shape: bf16[8,32], index: 2, kind: output, shape index: {}]
  %s3 = sld [smem:[#allocation0]]
  $region22: #{tpu_custom_call.1} parent=0
    _
  %s5 = ssub.s32 1, %s3
  %s6 = scalar_select 0, %s5, %s3
  %7 = sst [smem:[#allocation2]] %s0
  $region1: #{tpu_custom_call.1} parent=0
    #allocation3 [shape = 'u8[4096]{0}', space=vmem, size = 0x1000, scoped, tag = 'input window, operand 1, single buffered']
    #allocation4 [shape = 's32[1]{0}', space=sflag, size = 0x4, scoped, tag = 'scoped memory for tpu_custom_call.1']
    #allocation5 [shape = 's32[1]{0}', space=sflag, size = 0x4, scoped, tag = 'scoped memory for tpu_custom_call.1']
    #allocation6 [shape = 'u8[2048]{0}', space=vmem, size = 0x800, scoped, tag = 'output window, operand 0, single buffered']
    %8 = vsyncpa [#allocation4], 0
    %9 = vsyncpa [#allocation5], 0
    // Predicated region
    $region2: #{tpu_custom_call.1} parent=1 // pred_check
      _
    $region3: #{tpu_custom_call.1} parent=1 // pred_check_branch
      %11 = sbr.rel (0) target = $region5
    $region4: #{tpu_custom_call.1} parent=1 // pred_region
      _
    $region5: #{tpu_custom_call.1} parent=1 // pred_fallthru
      _
    // Predicated region
    $region6: #{tpu_custom_call.1} parent=1 // pred_check
      _
    $region7: #{tpu_custom_call.1} parent=1 // pred_check_branch
      %13 = sbr.rel (0) target = $region9
    $region8: #{tpu_custom_call.1} parent=1 // pred_region
      %15 = vsyncadd [#allocation4], 0
      %s17 = sshll.u32 %s1, 4
      %s18 = int_to_ptr.hbm [resolvable:$true] %s17
      %s19 = sshll.u32 [#allocation3], 4
      %s20 = int_to_ptr.vmem [resolvable:$true] %s19
      %22 = dma.hbm_to_vmem [thread:$0]  %s18, 128, %s20, [#allocation4]
    $region9: #{tpu_custom_call.1} parent=1 // pred_fallthru
      _
    // Predicated region
    $region10: #{tpu_custom_call.1} parent=1 // pred_check
      _
    $region11: #{tpu_custom_call.1} parent=1 // pred_check_branch
      %24 = sbr.rel (0) target = $region13
    $region12: #{tpu_custom_call.1} parent=1 // pred_region
      %26 = dma.done [#allocation4], 128
    $region13: #{tpu_custom_call.1} parent=1 // pred_fallthru
      _
    %v27 = vld [vmem:[#allocation3] sm:$0xff]
    %v28 = vmul.f32 %v27, %v27
    %vm29 = vcmask 261120
    %v30 = vsel %vm29, %v28, 0.0
    %31 = vadd.xlane.f32.xlu0 %v30
    %v32 = vpop.xlane.xlu0 %31
    %v33 = vrsqrt.pop %v32
    %v34 = vmul.f32 %v33, %v32
    %v35 = vmul.f32 %v34, %v33
    %v36 = vmul.f32 0.5, %v35
    %v37 = vsub.f32 1.5, %v36
    %v38 = vmul.f32 %v33, %v37
    %vm39 = vweird.f32 %v32
    %vm40 = vweird.f32 %v33
    %vm41 = vmor %vm39, %vm40
    %v42 = vsel %vm41, %v33, %v38
    %s43 = sld [smem:[#allocation2]]
    %v44 = vstv %s43
    %v45 = vmul.f32 %v44, %v42
    %v46 = vmul.f32 %v27, %v45
    %v47 = vpack.c.bf16 %v46, %v46
    %vm48 = vcmask 257024
    %49 = vst.msk [vmem:[#allocation6] sm:$0xf] %vm48, %v47
    // Predicated region
    $region14: #{tpu_custom_call.1} parent=1 // pred_check
      _
    $region15: #{tpu_custom_call.1} parent=1 // pred_check_branch
      %51 = sbr.rel (0) target = $region17
    $region16: #{tpu_custom_call.1} parent=1 // pred_region
      %53 = vsyncadd [#allocation5], 0
      %s55 = sshll.u32 [#allocation6], 4
      %s56 = int_to_ptr.vmem [resolvable:$true] %s55
      %s57 = sshll.u32 %s2, 4
      %s58 = int_to_ptr.hbm [resolvable:$true] %s57
      %60 = dma.vmem_to_hbm [thread:$0]  %s56, 64, %s58, [#allocation5]
    $region17: #{tpu_custom_call.1} parent=1 // pred_fallthru
      _
    // Predicated region
    $region18: #{tpu_custom_call.1} parent=1 // pred_check
      _
    $region19: #{tpu_custom_call.1} parent=1 // pred_check_branch
      %62 = sbr.rel (0) target = $region21
    $region20: #{tpu_custom_call.1} parent=1 // pred_region
      %64 = dma.done [#allocation5], 64
    $region21: #{tpu_custom_call.1} parent=1 // pred_fallthru
      _
    %65 = vsyncpa [#allocation4], 1
    %66 = vsyncpa [#allocation5], 1

</llo_original>
